<compile_context>
chip_gen: v6e
topology: v6e:2x2x1
jax: 0.10.0
libtpu: 0.0.40
codegen_flags: <defaults>
</compile_context>

<pallas_src>
from functools import partial

import jax
import jax.numpy as jnp
from jax.experimental import pallas as pl
from jax.experimental.pallas import tpu as pltpu


def slk_kernel(x_ref, w_ref, b_ref, o_ref, xpad_ref, *, H, W, TC, KH, KW, PH, PW):
    # x_ref    : (H, W*TC)              input block, (W, C-group) flattened on lanes
    # w_ref    : (KH, KW, W*TC)         fully folded depthwise weights (lane-tiled)
    # b_ref    : (1, W*TC)              folded per-channel bias (lane-tiled)
    # o_ref    : (H, W*TC)              output block
    # xpad_ref : (H+2*PH, (W+2*PW)*TC)  VMEM scratch holding the zero-padded slab
    LW = W * TC
    Hp = H + 2 * PH
    LWp = (W + 2 * PW) * TC
    dt = xpad_ref.dtype

    # ---- build the padded slab in VMEM: zero only the halo strips, copy interior once ----
    if PH > 0:
        xpad_ref[0:PH, :] = jnp.zeros((PH, LWp), dt)
        xpad_ref[PH + H:Hp, :] = jnp.zeros((PH, LWp), dt)
    if PW > 0:
        xpad_ref[PH:PH + H, 0:PW * TC] = jnp.zeros((H, PW * TC), dt)
        xpad_ref[PH:PH + H, PW * TC + LW:LWp] = jnp.zeros((H, PW * TC), dt)
    xpad_ref[PH:PH + H, PW * TC:PW * TC + LW] = x_ref[...]

    # accumulator starts from the folded bias (all 5 BN shifts already merged)
    acc = jnp.broadcast_to(b_ref[...].astype(jnp.float32), (H, LW))

    # kx-outer: one lane-shifted strip per kx (KW realignments total), then the ky
    # inner loop is pure row offsets on that strip.
    for kx in range(KW):
        strip = xpad_ref[:, kx * TC:kx * TC + LW].astype(jnp.float32)   # (Hp, LW)
        for ky in range(KH):
            w_tap = w_ref[ky, kx, :].astype(jnp.float32).reshape(1, LW)
            acc = acc + strip[ky:ky + H, :] * w_tap

    o_ref[...] = acc.astype(o_ref.dtype)


def slk_block(x, w1, w2, w3, ws, scale, bias, *, KH, KW, SK,
              vmem_budget_bytes=24 * 1024 * 1024):
    """x: (N, C, H, W) NCHW.  w1/w2/w3: (C, KH, KW) depthwise, ws: (C, SK, SK).
    scale/bias: (5, C) folded BN affines for [LoRA1, LoRA2, LoRA3, small, norm]."""
    N, C, H, W = x.shape
    PH, PW = KH // 2, KW // 2
    # The folds below (small kernel -> centered window, residual -> center tap) require
    # odd, centered kernels with the small kernel inside the large-kernel support.
    assert KH % 2 == 1 and KW % 2 == 1 and SK % 2 == 1
    assert SK <= KH and SK <= KW

    # ------------- host-side algebraic fold: 3 LoRA branches + small kernel + 5 BNs -------
    f32 = jnp.float32
    s = scale.astype(f32)
    b = bias.astype(f32)
    w_eff = s[4][:, None, None] * (s[0][:, None, None] * w1.astype(f32)
                                   + s[1][:, None, None] * w2.astype(f32)
                                   + s[2][:, None, None] * w3.astype(f32))
    ws_eff = (s[4] * s[3])[:, None, None] * ws.astype(f32)
    oy, ox = (KH - SK) // 2, (KW - SK) // 2
    w_eff = w_eff.at[:, oy:oy + SK, ox:ox + SK].add(ws_eff)   # small kernel -> large kernel
    w_eff = w_eff.at[:, KH // 2, KW // 2].add(1.0)            # identity residual -> center tap
    b_eff = s[4] * (b[0] + b[1] + b[2] + b[3]) + b[4]         # all BN shifts -> single bias

    # ------- channel grouping: bound per-step VMEM, prefer lane-dense W*TC % 128 == 0 -----
    itemsize = jnp.dtype(x.dtype).itemsize

    def per_step_bytes(tc):
        lane = W * tc
        xpad = (H + 2 * PH) * (W + 2 * PW) * tc * itemsize    # padded scratch
        io = 2 * 2 * H * lane * itemsize                      # double-buffered in + out
        wts = 2 * (KH * KW * lane + lane) * 4                 # double-buffered weights + bias
        accb = H * lane * 4                                   # f32 accumulator
        return xpad + io + wts + accb

    divisors = [d for d in range(C, 0, -1) if C % d == 0]
    fits = [d for d in divisors if per_step_bytes(d) <= vmem_budget_bytes] or [1]
    lane_dense = [d for d in fits if (W * d) % 128 == 0]
    TC = lane_dense[0] if lane_dense else fits[0]
    G = C // TC
    LW = W * TC
    # TODO(synk): H-tiling with a +-PH halo for feature maps so large that even TC == 1
    #             does not fit the VMEM budget.

    # ------- lane-dense layout: (N, G, H, W*TC); C-group interleaved with W on lanes ------
    xg = jnp.transpose(x, (0, 2, 3, 1)).reshape(N, H, W, G, TC)
    xg = jnp.transpose(xg, (0, 3, 1, 2, 4)).reshape(N, G, H, LW)

    wg = jnp.transpose(w_eff, (1, 2, 0)).reshape(KH, KW, G, TC)
    wg = jnp.transpose(wg, (2, 0, 1, 3))                                  # (G, KH, KW, TC)
    w_lane = jnp.broadcast_to(wg[:, :, :, None, :],
                              (G, KH, KW, W, TC)).reshape(G, KH, KW, LW)
    b_lane = jnp.broadcast_to(b_eff.reshape(G, TC)[:, None, :],
                              (G, W, TC)).reshape(G, 1, LW)

    kernel = partial(slk_kernel, H=H, W=W, TC=TC, KH=KH, KW=KW, PH=PH, PW=PW)

    cost = pl.CostEstimate(
        flops=2 * N * C * H * W * KH * KW,
        transcendentals=0,
        bytes_accessed=2 * N * C * H * W * itemsize + (KH * KW + 1) * C * W * 4,
    )

    footprint = per_step_bytes(TC)
    vmem_limit = int(min(max(2 * footprint, 16 * 1024 * 1024), 64 * 1024 * 1024))

    out = pl.pallas_call(
        kernel,
        out_shape=jax.ShapeDtypeStruct((N, G, H, LW), x.dtype),
        grid=(N, G),
        in_specs=[
            pl.BlockSpec((pl.Squeezed(), pl.Squeezed(), H, LW), lambda n, g: (n, g, 0, 0)),
            pl.BlockSpec((pl.Squeezed(), KH, KW, LW), lambda n, g: (g, 0, 0, 0)),
            pl.BlockSpec((pl.Squeezed(), 1, LW), lambda n, g: (g, 0, 0)),
        ],
        out_specs=pl.BlockSpec((pl.Squeezed(), pl.Squeezed(), H, LW),
                               lambda n, g: (n, g, 0, 0)),
        scratch_shapes=[pltpu.VMEM((H + 2 * PH, (W + 2 * PW) * TC), x.dtype)],
        compiler_params=pltpu.CompilerParams(
            dimension_semantics=("parallel", "parallel"),
            vmem_limit_bytes=vmem_limit),
        cost_estimate=cost,
    )(xg, w_lane, b_lane)

    out = out.reshape(N, G, H, W, TC)
    out = jnp.transpose(out, (0, 2, 3, 1, 4)).reshape(N, H, W, C)
    return jnp.transpose(out, (0, 3, 1, 2))                   # back to NCHW


# -------------------- pure-JAX reference (for correctness check) --------------------
def _dw_conv_ref(x, w):
    # x: (N, C, H, W), w: (C, kh, kw) depthwise
    kh, kw = w.shape[1], w.shape[2]
    return jax.lax.conv_general_dilated(
        x, w[:, None, :, :], window_strides=(1, 1),
        padding=[(kh // 2, kh // 2), (kw // 2, kw // 2)],
        feature_group_count=x.shape[1],
        dimension_numbers=("NCHW", "OIHW", "NCHW"))


def ref_forward(x, w1, w2, w3, ws, scale, bias):
    def bn(y, i):
        return y * scale[i][None, :, None, None] + bias[i][None, :, None, None]

    y = bn(_dw_conv_ref(x, w1), 0) + bn(_dw_conv_ref(x, w2), 1) \
        + bn(_dw_conv_ref(x, w3), 2) + bn(_dw_conv_ref(x, ws), 3)
    out = bn(y, 4)
    return x + out


def fold_bn(gamma, beta, mean, var, eps=1e-5):
    s = gamma / jnp.sqrt(var + eps)
    return s, beta - mean * s


if __name__ == "__main__":
    # Shapes consistent with the module: in_channels == dw_channels == 8,
    # block_lk_size = (9, 5) -> large kernel (3, 5), small_kernel = 3.
    N, C, H, W = 2, 8, 16, 16
    block_lk_size = (9, 5)
    KH, KW = block_lk_size[0] // 3, block_lk_size[1]
    SK = 3

    key = jax.random.PRNGKey(0)
    ks = jax.random.split(key, 8)
    x = jax.random.normal(ks[0], (N, C, H, W), jnp.float32)

    # depthwise conv weights (groups = in_channels, 1 filter per channel, no bias)
    w1 = 0.1 * jax.random.normal(ks[1], (C, KH, KW), jnp.float32)
    w2 = 0.1 * jax.random.normal(ks[2], (C, KH, KW), jnp.float32)
    w3 = 0.1 * jax.random.normal(ks[3], (C, KH, KW), jnp.float32)
    ws = 0.1 * jax.random.normal(ks[4], (C, SK, SK), jnp.float32)

    # 5 BatchNorms (LoRA1, LoRA2, LoRA3, small_conv, norm): deterministic eval-mode stats
    cidx = jnp.arange(C, dtype=jnp.float32)
    scales, biases = [], []
    for i in range(5):
        gamma = 1.0 + 0.1 * jnp.sin(cidx + i)
        beta = 0.05 * jnp.cos(cidx + 2.0 * i)
        mean = 0.02 * (cidx - i)
        var = 1.0 + 0.1 * jnp.abs(jnp.sin(2.0 * cidx + i))
        sc, bs = fold_bn(gamma, beta, mean, var)
        scales.append(sc)
        biases.append(bs)
    scale = jnp.stack(scales)   # (5, C)
    bias = jnp.stack(biases)    # (5, C)

    out = slk_block(x, w1, w2, w3, ws, scale, bias, KH=KH, KW=KW, SK=SK)
    out = jax.block_until_ready(out)

    ref = ref_forward(x, w1, w2, w3, ws, scale, bias)
    assert out.shape == (N, C, H, W)
    assert jnp.allclose(out, ref, rtol=1e-4, atol=1e-4), \
        float(jnp.max(jnp.abs(out - ref)))

    print("KERNEL_OK")
</pallas_src>

<mosaic_0001>
module attributes {stable_mosaic.version = 11 : i64} {
  func.func @slk_kernel(%arg0: i32, %arg1: i32, %arg2: memref<1x1x16x128xf32, #tpu.memory_space<vmem>>, %arg3: memref<1x3x5x128xf32, #tpu.memory_space<vmem>>, %arg4: memref<1x1x128xf32, #tpu.memory_space<vmem>>, %arg5: memref<1x1x16x128xf32, #tpu.memory_space<vmem>>, %arg6: memref<18x160xf32, #tpu.memory_space<vmem>>) attributes {dimension_semantics = [#tpu.dimension_semantics<parallel>, #tpu.dimension_semantics<parallel>], iteration_bounds = array<i64: 2, 1>, scalar_prefetch = 0 : i64, scratch_operands = 1 : i64, tpu.core_type = #tpu.core_type<tc>, window_params = [{transform_indices = @transform_0, window_bounds = array<i64: 1, 1, 16, 128>}, {transform_indices = @transform_1, window_bounds = array<i64: 1, 3, 5, 128>}, {transform_indices = @transform_2, window_bounds = array<i64: 1, 1, 128>}, {transform_indices = @transform_3, window_bounds = array<i64: 1, 1, 16, 128>}]} {
    %cst = arith.constant 0.000000e+00 : f32
    %0 = vector.broadcast %cst : f32 to vector<1x160xf32>
    %c0 = arith.constant 0 : index
    %c0_0 = arith.constant 0 : index
    %1 = vector.load %arg6[%c0, %c0_0] : memref<18x160xf32, #tpu.memory_space<vmem>>, vector<1x160xf32>
    tpu.vector_store %arg6[%c0, %c0_0], %0 {strides = array<i32>} : memref<18x160xf32, #tpu.memory_space<vmem>>, vector<1x160xf32>,
    %cst_1 = arith.constant 0.000000e+00 : f32
    %2 = vector.broadcast %cst_1 : f32 to vector<1x160xf32>
    %c17 = arith.constant 17 : index
    %c0_2 = arith.constant 0 : index
    %3 = vector.load %arg6[%c17, %c0_2] : memref<18x160xf32, #tpu.memory_space<vmem>>, vector<1x160xf32>
    tpu.vector_store %arg6[%c17, %c0_2], %2 {strides = array<i32>} : memref<18x160xf32, #tpu.memory_space<vmem>>, vector<1x160xf32>,
    %cst_3 = arith.constant 0.000000e+00 : f32
    %4 = vector.broadcast %cst_3 : f32 to vector<16x16xf32>
    %c1 = arith.constant 1 : index
    %c0_4 = arith.constant 0 : index
    %5 = vector.load %arg6[%c1, %c0_4] : memref<18x160xf32, #tpu.memory_space<vmem>>, vector<16x16xf32>
    tpu.vector_store %arg6[%c1, %c0_4], %4 {strides = array<i32>} : memref<18x160xf32, #tpu.memory_space<vmem>>, vector<16x16xf32>,
    %cst_5 = arith.constant 0.000000e+00 : f32
    %6 = vector.broadcast %cst_5 : f32 to vector<16x16xf32>
    %c1_6 = arith.constant 1 : index
    %c144 = arith.constant 144 : index
    %7 = vector.load %arg6[%c1_6, %c144] : memref<18x160xf32, #tpu.memory_space<vmem>>, vector<16x16xf32>
    tpu.vector_store %arg6[%c1_6, %c144], %6 {strides = array<i32>} : memref<18x160xf32, #tpu.memory_space<vmem>>, vector<16x16xf32>,
    %c0_7 = arith.constant 0 : index
    %c0_8 = arith.constant 0 : index
    %c0_9 = arith.constant 0 : index
    %c0_10 = arith.constant 0 : index
    %8 = vector.load %arg2[%c0_7, %c0_8, %c0_9, %c0_10] : memref<1x1x16x128xf32, #tpu.memory_space<vmem>>, vector<1x1x16x128xf32>
    %9 = vector.shape_cast %8 : vector<1x1x16x128xf32> to vector<16x128xf32>
    %c1_11 = arith.constant 1 : index
    %c16 = arith.constant 16 : index
    %10 = vector.load %arg6[%c1_11, %c16] : memref<18x160xf32, #tpu.memory_space<vmem>>, vector<16x128xf32>
    tpu.vector_store %arg6[%c1_11, %c16], %9 {strides = array<i32>} : memref<18x160xf32, #tpu.memory_space<vmem>>, vector<16x128xf32>,
    %c0_12 = arith.constant 0 : index
    %c0_13 = arith.constant 0 : index
    %c0_14 = arith.constant 0 : index
    %11 = vector.load %arg4[%c0_12, %c0_13, %c0_14] : memref<1x1x128xf32, #tpu.memory_space<vmem>>, vector<1x1x128xf32>
    %12 = vector.shape_cast %11 : vector<1x1x128xf32> to vector<1x128xf32>
    %13 = vector.shape_cast %12 : vector<1x128xf32> to vector<1x128xf32>
    %14 = vector.broadcast %13 : vector<1x128xf32> to vector<16x128xf32>
    %c0_15 = arith.constant 0 : index
    %c0_16 = arith.constant 0 : index
    %15 = vector.load %arg6[%c0_15, %c0_16] : memref<18x160xf32, #tpu.memory_space<vmem>>, vector<18x128xf32>
    %c0_17 = arith.constant 0 : index
    %c0_18 = arith.constant 0 : index
    %c0_19 = arith.constant 0 : index
    %c0_20 = arith.constant 0 : index
    %16 = vector.load %arg3[%c0_17, %c0_18, %c0_19, %c0_20] : memref<1x3x5x128xf32, #tpu.memory_space<vmem>>, vector<1x1x1x128xf32>
    %17 = vector.shape_cast %16 : vector<1x1x1x128xf32> to vector<128xf32>
    %18 = vector.shape_cast %17 : vector<128xf32> to vector<1x128xf32>
    %19 = vector.extract_strided_slice %15 {offsets = [0, 0], sizes = [16, 128], strides = [1, 1]} : vector<18x128xf32> to vector<16x128xf32>
    %20 = vector.broadcast %18 : vector<1x128xf32> to vector<16x128xf32>
    %21 = arith.mulf %19, %20 : vector<16x128xf32>
    %22 = arith.addf %14, %21 : vector<16x128xf32>
    %c0_21 = arith.constant 0 : index
    %c1_22 = arith.constant 1 : index
    %c0_23 = arith.constant 0 : index
    %c0_24 = arith.constant 0 : index
    %23 = vector.load %arg3[%c0_21, %c1_22, %c0_23, %c0_24] : memref<1x3x5x128xf32, #tpu.memory_space<vmem>>, vector<1x1x1x128xf32>
    %24 = vector.shape_cast %23 : vector<1x1x1x128xf32> to vector<128xf32>
    %25 = vector.shape_cast %24 : vector<128xf32> to vector<1x128xf32>
    %26 = vector.extract_strided_slice %15 {offsets = [1, 0], sizes = [16, 128], strides = [1, 1]} : vector<18x128xf32> to vector<16x128xf32>
    %27 = vector.broadcast %25 : vector<1x128xf32> to vector<16x128xf32>
    %28 = arith.mulf %26, %27 : vector<16x128xf32>
    %29 = arith.addf %22, %28 : vector<16x128xf32>
    %c0_25 = arith.constant 0 : index
    %c2 = arith.constant 2 : index
    %c0_26 = arith.constant 0 : index
    %c0_27 = arith.constant 0 : index
    %30 = vector.load %arg3[%c0_25, %c2, %c0_26, %c0_27] : memref<1x3x5x128xf32, #tpu.memory_space<vmem>>, vector<1x1x1x128xf32>
    %31 = vector.shape_cast %30 : vector<1x1x1x128xf32> to vector<128xf32>
    %32 = vector.shape_cast %31 : vector<128xf32> to vector<1x128xf32>
    %33 = vector.extract_strided_slice %15 {offsets = [2, 0], sizes = [16, 128], strides = [1, 1]} : vector<18x128xf32> to vector<16x128xf32>
    %34 = vector.broadcast %32 : vector<1x128xf32> to vector<16x128xf32>
    %35 = arith.mulf %33, %34 : vector<16x128xf32>
    %36 = arith.addf %29, %35 : vector<16x128xf32>
    %c0_28 = arith.constant 0 : index
    %c8 = arith.constant 8 : index
    %37 = vector.load %arg6[%c0_28, %c8] : memref<18x160xf32, #tpu.memory_space<vmem>>, vector<18x128xf32>
    %c0_29 = arith.constant 0 : index
    %c0_30 = arith.constant 0 : index
    %c1_31 = arith.constant 1 : index
    %c0_32 = arith.constant 0 : index
    %38 = vector.load %arg3[%c0_29, %c0_30, %c1_31, %c0_32] : memref<1x3x5x128xf32, #tpu.memory_space<vmem>>, vector<1x1x1x128xf32>
    %39 = vector.shape_cast %38 : vector<1x1x1x128xf32> to vector<128xf32>
    %40 = vector.shape_cast %39 : vector<128xf32> to vector<1x128xf32>
    %41 = vector.extract_strided_slice %37 {offsets = [0, 0], sizes = [16, 128], strides = [1, 1]} : vector<18x128xf32> to vector<16x128xf32>
    %42 = vector.broadcast %40 : vector<1x128xf32> to vector<16x128xf32>
    %43 = arith.mulf %41, %42 : vector<16x128xf32>
    %44 = arith.addf %36, %43 : vector<16x128xf32>
    %c0_33 = arith.constant 0 : index
    %c1_34 = arith.constant 1 : index
    %c1_35 = arith.constant 1 : index
    %c0_36 = arith.constant 0 : index
    %45 = vector.load %arg3[%c0_33, %c1_34, %c1_35, %c0_36] : memref<1x3x5x128xf32, #tpu.memory_space<vmem>>, vector<1x1x1x128xf32>
    %46 = vector.shape_cast %45 : vector<1x1x1x128xf32> to vector<128xf32>
    %47 = vector.shape_cast %46 : vector<128xf32> to vector<1x128xf32>
    %48 = vector.extract_strided_slice %37 {offsets = [1, 0], sizes = [16, 128], strides = [1, 1]} : vector<18x128xf32> to vector<16x128xf32>
    %49 = vector.broadcast %47 : vector<1x128xf32> to vector<16x128xf32>
    %50 = arith.mulf %48, %49 : vector<16x128xf32>
    %51 = arith.addf %44, %50 : vector<16x128xf32>
    %c0_37 = arith.constant 0 : index
    %c2_38 = arith.constant 2 : index
    %c1_39 = arith.constant 1 : index
    %c0_40 = arith.constant 0 : index
    %52 = vector.load %arg3[%c0_37, %c2_38, %c1_39, %c0_40] : memref<1x3x5x128xf32, #tpu.memory_space<vmem>>, vector<1x1x1x128xf32>
    %53 = vector.shape_cast %52 : vector<1x1x1x128xf32> to vector<128xf32>
    %54 = vector.shape_cast %53 : vector<128xf32> to vector<1x128xf32>
    %55 = vector.extract_strided_slice %37 {offsets = [2, 0], sizes = [16, 128], strides = [1, 1]} : vector<18x128xf32> to vector<16x128xf32>
    %56 = vector.broadcast %54 : vector<1x128xf32> to vector<16x128xf32>
    %57 = arith.mulf %55, %56 : vector<16x128xf32>
    %58 = arith.addf %51, %57 : vector<16x128xf32>
    %c0_41 = arith.constant 0 : index
    %c16_42 = arith.constant 16 : index
    %59 = vector.load %arg6[%c0_41, %c16_42] : memref<18x160xf32, #tpu.memory_space<vmem>>, vector<18x128xf32>
    %c0_43 = arith.constant 0 : index
    %c0_44 = arith.constant 0 : index
    %c2_45 = arith.constant 2 : index
    %c0_46 = arith.constant 0 : index
    %60 = vector.load %arg3[%c0_43, %c0_44, %c2_45, %c0_46] : memref<1x3x5x128xf32, #tpu.memory_space<vmem>>, vector<1x1x1x128xf32>
    %61 = vector.shape_cast %60 : vector<1x1x1x128xf32> to vector<128xf32>
    %62 = vector.shape_cast %61 : vector<128xf32> to vector<1x128xf32>
    %63 = vector.extract_strided_slice %59 {offsets = [0, 0], sizes = [16, 128], strides = [1, 1]} : vector<18x128xf32> to vector<16x128xf32>
    %64 = vector.broadcast %62 : vector<1x128xf32> to vector<16x128xf32>
    %65 = arith.mulf %63, %64 : vector<16x128xf32>
    %66 = arith.addf %58, %65 : vector<16x128xf32>
    %c0_47 = arith.constant 0 : index
    %c1_48 = arith.constant 1 : index
    %c2_49 = arith.constant 2 : index
    %c0_50 = arith.constant 0 : index
    %67 = vector.load %arg3[%c0_47, %c1_48, %c2_49, %c0_50] : memref<1x3x5x128xf32, #tpu.memory_space<vmem>>, vector<1x1x1x128xf32>
    %68 = vector.shape_cast %67 : vector<1x1x1x128xf32> to vector<128xf32>
    %69 = vector.shape_cast %68 : vector<128xf32> to vector<1x128xf32>
    %70 = vector.extract_strided_slice %59 {offsets = [1, 0], sizes = [16, 128], strides = [1, 1]} : vector<18x128xf32> to vector<16x128xf32>
    %71 = vector.broadcast %69 : vector<1x128xf32> to vector<16x128xf32>
    %72 = arith.mulf %70, %71 : vector<16x128xf32>
    %73 = arith.addf %66, %72 : vector<16x128xf32>
    %c0_51 = arith.constant 0 : index
    %c2_52 = arith.constant 2 : index
    %c2_53 = arith.constant 2 : index
    %c0_54 = arith.constant 0 : index
    %74 = vector.load %arg3[%c0_51, %c2_52, %c2_53, %c0_54] : memref<1x3x5x128xf32, #tpu.memory_space<vmem>>, vector<1x1x1x128xf32>
    %75 = vector.shape_cast %74 : vector<1x1x1x128xf32> to vector<128xf32>
    %76 = vector.shape_cast %75 : vector<128xf32> to vector<1x128xf32>
    %77 = vector.extract_strided_slice %59 {offsets = [2, 0], sizes = [16, 128], strides = [1, 1]} : vector<18x128xf32> to vector<16x128xf32>
    %78 = vector.broadcast %76 : vector<1x128xf32> to vector<16x128xf32>
    %79 = arith.mulf %77, %78 : vector<16x128xf32>
    %80 = arith.addf %73, %79 : vector<16x128xf32>
    %c0_55 = arith.constant 0 : index
    %c24 = arith.constant 24 : index
    %81 = vector.load %arg6[%c0_55, %c24] : memref<18x160xf32, #tpu.memory_space<vmem>>, vector<18x128xf32>
    %c0_56 = arith.constant 0 : index
    %c0_57 = arith.constant 0 : index
    %c3 = arith.constant 3 : index
    %c0_58 = arith.constant 0 : index
    %82 = vector.load %arg3[%c0_56, %c0_57, %c3, %c0_58] : memref<1x3x5x128xf32, #tpu.memory_space<vmem>>, vector<1x1x1x128xf32>
    %83 = vector.shape_cast %82 : vector<1x1x1x128xf32> to vector<128xf32>
    %84 = vector.shape_cast %83 : vector<128xf32> to vector<1x128xf32>
    %85 = vector.extract_strided_slice %81 {offsets = [0, 0], sizes = [16, 128], strides = [1, 1]} : vector<18x128xf32> to vector<16x128xf32>
    %86 = vector.broadcast %84 : vector<1x128xf32> to vector<16x128xf32>
    %87 = arith.mulf %85, %86 : vector<16x128xf32>
    %88 = arith.addf %80, %87 : vector<16x128xf32>
    %c0_59 = arith.constant 0 : index
    %c1_60 = arith.constant 1 : index
    %c3_61 = arith.constant 3 : index
    %c0_62 = arith.constant 0 : index
    %89 = vector.load %arg3[%c0_59, %c1_60, %c3_61, %c0_62] : memref<1x3x5x128xf32, #tpu.memory_space<vmem>>, vector<1x1x1x128xf32>
    %90 = vector.shape_cast %89 : vector<1x1x1x128xf32> to vector<128xf32>
    %91 = vector.shape_cast %90 : vector<128xf32> to vector<1x128xf32>
    %92 = vector.extract_strided_slice %81 {offsets = [1, 0], sizes = [16, 128], strides = [1, 1]} : vector<18x128xf32> to vector<16x128xf32>
    %93 = vector.broadcast %91 : vector<1x128xf32> to vector<16x128xf32>
    %94 = arith.mulf %92, %93 : vector<16x128xf32>
    %95 = arith.addf %88, %94 : vector<16x128xf32>
    %c0_63 = arith.constant 0 : index
    %c2_64 = arith.constant 2 : index
    %c3_65 = arith.constant 3 : index
    %c0_66 = arith.constant 0 : index
    %96 = vector.load %arg3[%c0_63, %c2_64, %c3_65, %c0_66] : memref<1x3x5x128xf32, #tpu.memory_space<vmem>>, vector<1x1x1x128xf32>
    %97 = vector.shape_cast %96 : vector<1x1x1x128xf32> to vector<128xf32>
    %98 = vector.shape_cast %97 : vector<128xf32> to vector<1x128xf32>
    %99 = vector.extract_strided_slice %81 {offsets = [2, 0], sizes = [16, 128], strides = [1, 1]} : vector<18x128xf32> to vector<16x128xf32>
    %100 = vector.broadcast %98 : vector<1x128xf32> to vector<16x128xf32>
    %101 = arith.mulf %99, %100 : vector<16x128xf32>
    %102 = arith.addf %95, %101 : vector<16x128xf32>
    %c0_67 = arith.constant 0 : index
    %c32 = arith.constant 32 : index
    %103 = vector.load %arg6[%c0_67, %c32] : memref<18x160xf32, #tpu.memory_space<vmem>>, vector<18x128xf32>
    %c0_68 = arith.constant 0 : index
    %c0_69 = arith.constant 0 : index
    %c4 = arith.constant 4 : index
    %c0_70 = arith.constant 0 : index
    %104 = vector.load %arg3[%c0_68, %c0_69, %c4, %c0_70] : memref<1x3x5x128xf32, #tpu.memory_space<vmem>>, vector<1x1x1x128xf32>
    %105 = vector.shape_cast %104 : vector<1x1x1x128xf32> to vector<128xf32>
    %106 = vector.shape_cast %105 : vector<128xf32> to vector<1x128xf32>
    %107 = vector.extract_strided_slice %103 {offsets = [0, 0], sizes = [16, 128], strides = [1, 1]} : vector<18x128xf32> to vector<16x128xf32>
    %108 = vector.broadcast %106 : vector<1x128xf32> to vector<16x128xf32>
    %109 = arith.mulf %107, %108 : vector<16x128xf32>
    %110 = arith.addf %102, %109 : vector<16x128xf32>
    %c0_71 = arith.constant 0 : index
    %c1_72 = arith.constant 1 : index
    %c4_73 = arith.constant 4 : index
    %c0_74 = arith.constant 0 : index
    %111 = vector.load %arg3[%c0_71, %c1_72, %c4_73, %c0_74] : memref<1x3x5x128xf32, #tpu.memory_space<vmem>>, vector<1x1x1x128xf32>
    %112 = vector.shape_cast %111 : vector<1x1x1x128xf32> to vector<128xf32>
    %113 = vector.shape_cast %112 : vector<128xf32> to vector<1x128xf32>
    %114 = vector.extract_strided_slice %103 {offsets = [1, 0], sizes = [16, 128], strides = [1, 1]} : vector<18x128xf32> to vector<16x128xf32>
    %115 = vector.broadcast %113 : vector<1x128xf32> to vector<16x128xf32>
    %116 = arith.mulf %114, %115 : vector<16x128xf32>
    %117 = arith.addf %110, %116 : vector<16x128xf32>
    %c0_75 = arith.constant 0 : index
    %c2_76 = arith.constant 2 : index
    %c4_77 = arith.constant 4 : index
    %c0_78 = arith.constant 0 : index
    %118 = vector.load %arg3[%c0_75, %c2_76, %c4_77, %c0_78] : memref<1x3x5x128xf32, #tpu.memory_space<vmem>>, vector<1x1x1x128xf32>
    %119 = vector.shape_cast %118 : vector<1x1x1x128xf32> to vector<128xf32>
    %120 = vector.shape_cast %119 : vector<128xf32> to vector<1x128xf32>
    %121 = vector.extract_strided_slice %103 {offsets = [2, 0], sizes = [16, 128], strides = [1, 1]} : vector<18x128xf32> to vector<16x128xf32>
    %122 = vector.broadcast %120 : vector<1x128xf32> to vector<16x128xf32>
    %123 = arith.mulf %121, %122 : vector<16x128xf32>
    %124 = arith.addf %117, %123 : vector<16x128xf32>
    %c0_79 = arith.constant 0 : index
    %c0_80 = arith.constant 0 : index
    %c0_81 = arith.constant 0 : index
    %c0_82 = arith.constant 0 : index
    %125 = vector.load %arg5[%c0_79, %c0_80, %c0_81, %c0_82] : memref<1x1x16x128xf32, #tpu.memory_space<vmem>>, vector<1x1x16x128xf32>
    %126 = vector.shape_cast %125 : vector<1x1x16x128xf32> to vector<16x128xf32>
    %127 = vector.shape_cast %124 : vector<16x128xf32> to vector<1x1x16x128xf32>
    tpu.vector_store %arg5[%c0_79, %c0_80, %c0_81, %c0_82], %127 {strides = array<i32>} : memref<1x1x16x128xf32, #tpu.memory_space<vmem>>, vector<1x1x16x128xf32>,
    return
  }
  func.func @transform_0(%arg0: i32, %arg1: i32) -> (i32, i32, i32, i32) {
    %c0_i32 = arith.constant 0 : i32
    %c0_i32_0 = arith.constant 0 : i32
    %c0_i32_1 = arith.constant 0 : i32
    return %arg0, %arg1, %c0_i32, %c0_i32_0 : i32, i32, i32, i32
  }
  func.func @transform_1(%arg0: i32, %arg1: i32) -> (i32, i32, i32, i32) {
    %c0_i32 = arith.constant 0 : i32
    %c0_i32_0 = arith.constant 0 : i32
    %c0_i32_1 = arith.constant 0 : i32
    %c0_i32_2 = arith.constant 0 : i32
    return %arg1, %c0_i32, %c0_i32_0, %c0_i32_1 : i32, i32, i32, i32
  }
  func.func @transform_2(%arg0: i32, %arg1: i32) -> (i32, i32, i32) {
    %c0_i32 = arith.constant 0 : i32
    %c0_i32_0 = arith.constant 0 : i32
    %c0_i32_1 = arith.constant 0 : i32
    return %arg1, %c0_i32, %c0_i32_0 : i32, i32, i32
  }
  func.func @transform_3(%arg0: i32, %arg1: i32) -> (i32, i32, i32, i32) {
    %c0_i32 = arith.constant 0 : i32
    %c0_i32_0 = arith.constant 0 : i32
    %c0_i32_1 = arith.constant 0 : i32
    return %arg0, %arg1, %c0_i32, %c0_i32_0 : i32, i32, i32, i32
  }
}

</mosaic_0001>

<llo_original>
// kernel: tpu_custom_call.1
$region0: #{tpu_custom_call.1}
  #allocation0 [shape = 'u32[]', space=smem, size = 0x4, offset = 0x4, fixed_abs, tag = 'smem constant byte address 0x4 - core index']
  #allocation1 [shape = 'u32[144,128]{1,0:T(1,128)}', space=vmem, size = 0x12000, scoped, tag = 'internal scratch']
  #allocation2 [shape = 'f32[18,160]{1,0:T(8,128)}', space=vmem, size = 0x6000, scoped, tag = 'scratch operand']
  %s0 = inlined_call_operand.vmem [shape: f32[2,1,16,128], index: 0, kind: input, shape index: {}]
  %s1 = inlined_call_operand.vmem [shape: f32[1,3,5,128], index: 1, kind: input, shape index: {}]
  %s2 = inlined_call_operand.vmem [shape: f32[1,1,128], index: 2, kind: input, shape index: {}]
  %s3 = inlined_call_operand.hbm [shape: f32[2,1,16,128], index: 3, kind: output, shape index: {}]
  %s4 = sld [smem:[#allocation0]]
  $region45: #{tpu_custom_call.1} parent=0
    _
  %s6 = ssub.s32 1, %s4
  %s7 = scalar_select 0, %s6, %s4
  $region1: #{tpu_custom_call.1} parent=0
    #allocation3 [shape = 'u8[16384]{0}', space=vmem, size = 0x4000, scoped, tag = 'output window, operand 0']
    #allocation4 [shape = 's32[2]{0}', space=sflag, size = 0x8, scoped, tag = 'scoped memory for tpu_custom_call.1']
    %8 = vsyncpa [#allocation4], 0
    %s9 = scalar_lea.sflag [#allocation4], 1
    %10 = vsyncpa %s9, 0
    loop: start=0, step=1, limit=4
    $region2: #{tpu_custom_call.1} parent=1 // loop_pre_header
      _
    $region3: #{tpu_custom_call.1} parent=1 // loop_header
      %s12 = sphi 0, %s16
      %p13 = scmp.ge.s32.totalorder %s12, 4
      %s19 = sphi 0, %s31
      %s20 = sphi 0, %s27
      %s21 = sphi 0, %s19
      %s22 = sphi 0, %s20
      %s23 = sphi 0, %s21
      %s24 = sphi 0, %s22
      %s36 = sphi 0, %s38
      %s39 = sphi 0, %s36
      %s40 = sphi 0, %s39
      %s56 = sphi 0, %s40
      %s62 = sphi 0, %s64
      %s65 = sphi 0, %s62
      %s66 = sphi 0, %s65
      %s82 = sphi 0, %s66
      %s88 = sphi 0, %s90
      %s91 = sphi 0, %s88
      %s92 = sphi 0, %s91
      %s108 = sphi 0, %s92
      %s116 = sphi 0, %s118
      %s119 = sphi 0, %s116
      %s120 = sphi 0, %s119
      %s136 = sphi 0, %s120
    $region4: #{tpu_custom_call.1} parent=1 // loop_header_branch
      %15 = sbr.rel (%p13) target = $region8
    $region5: #{tpu_custom_call.1} parent=1 // loop_body
      %s17 = ssub.s32 %s12, 1
      %s18 = ssub.s32 %s12, 2
      %s25 = sadd.s32 1, %s20
      %p26 = scmp.ge.s32.totalorder %s25, 1
      %s27 = scalar_select %p26, 0, %s25
      %s28 = sadd.s32 1, %s19
      %s29 = scalar_select %p26, %s28, %s19
      %p30 = scmp.ge.s32.totalorder %s29, 2
      %s31 = scalar_select %p30, 0, %s29
      %s32 = ssub.s32 %s19, %s31
      %s33 = ssub.s32 %s20, %s27
      %s34 = sor.u32 %s32, %s33
      %p35 = scmp.eq.s32.totalorder %s34, 0
      %s37 = sadd.s32 %s36, 1
      %s38 = scalar_select %p35, %s36, %s37
      %p41 = pneg %p35
      %p42 = scmp.eq.s32.totalorder %s12, 1
      %p43 = por %p41, %p42
      %p44 = scmp.ne.s32.totalorder %s36, %s39
      %p45 = scmp.eq.s32.totalorder %s12, 0
      %p46 = por %p44, %p45
      %p47 = scmp.ne.s32.totalorder %s36, %s39
      %p48 = scmp.eq.s32.totalorder %s17, 1
      %p49 = por %p47, %p48
      %p50 = scmp.ne.s32.totalorder %s39, %s40
      %p51 = scmp.eq.s32.totalorder %s17, 0
      %p52 = por %p50, %p51
      %p53 = scmp.ne.s32.totalorder %s39, %s40
      %p54 = scmp.eq.s32.totalorder %s18, 1
      %p55 = por %p53, %p54
      %p57 = scmp.ne.s32.totalorder %s40, %s56
      %p58 = scmp.eq.s32.totalorder %s18, 0
      %p59 = por %p57, %p58
      %s60 = ssub.s32 %s20, %s27
      %p61 = scmp.eq.s32.totalorder %s60, 0
      %s63 = sadd.s32 %s62, 1
      %s64 = scalar_select %p61, %s62, %s63
      %p67 = pneg %p61
      %p68 = scmp.eq.s32.totalorder %s12, 1
      %p69 = por %p67, %p68
      %p70 = scmp.ne.s32.totalorder %s62, %s65
      %p71 = scmp.eq.s32.totalorder %s12, 0
      %p72 = por %p70, %p71
      %p73 = scmp.ne.s32.totalorder %s62, %s65
      %p74 = scmp.eq.s32.totalorder %s17, 1
      %p75 = por %p73, %p74
      %p76 = scmp.ne.s32.totalorder %s65, %s66
      %p77 = scmp.eq.s32.totalorder %s17, 0
      %p78 = por %p76, %p77
      %p79 = scmp.ne.s32.totalorder %s65, %s66
      %p80 = scmp.eq.s32.totalorder %s18, 1
      %p81 = por %p79, %p80
      %p83 = scmp.ne.s32.totalorder %s66, %s82
      %p84 = scmp.eq.s32.totalorder %s18, 0
      %p85 = por %p83, %p84
      %s86 = ssub.s32 %s20, %s27
      %p87 = scmp.eq.s32.totalorder %s86, 0
      %s89 = sadd.s32 %s88, 1
      %s90 = scalar_select %p87, %s88, %s89
      %p93 = pneg %p87
      %p94 = scmp.eq.s32.totalorder %s12, 1
      %p95 = por %p93, %p94
      %p96 = scmp.ne.s32.totalorder %s88, %s91
      %p97 = scmp.eq.s32.totalorder %s12, 0
      %p98 = por %p96, %p97
      %p99 = scmp.ne.s32.totalorder %s88, %s91
      %p100 = scmp.eq.s32.totalorder %s17, 1
      %p101 = por %p99, %p100
      %p102 = scmp.ne.s32.totalorder %s91, %s92
      %p103 = scmp.eq.s32.totalorder %s17, 0
      %p104 = por %p102, %p103
      %p105 = scmp.ne.s32.totalorder %s91, %s92
      %p106 = scmp.eq.s32.totalorder %s18, 1
      %p107 = por %p105, %p106
      %p109 = scmp.ne.s32.totalorder %s92, %s108
      %p110 = scmp.eq.s32.totalorder %s18, 0
      %p111 = por %p109, %p110
      %s112 = ssub.s32 %s19, %s31
      %s113 = ssub.s32 %s20, %s27
      %s114 = sor.u32 %s112, %s113
      %p115 = scmp.eq.s32.totalorder %s114, 0
      %s117 = sadd.s32 %s116, 1
      %s118 = scalar_select %p115, %s116, %s117
      %p121 = pneg %p115
      %p122 = scmp.eq.s32.totalorder %s12, 1
      %p123 = por %p121, %p122
      %p124 = scmp.ne.s32.totalorder %s116, %s119
      %p125 = scmp.eq.s32.totalorder %s12, 0
      %p126 = por %p124, %p125
      %p127 = scmp.ne.s32.totalorder %s116, %s119
      %p128 = scmp.eq.s32.totalorder %s17, 1
      %p129 = por %p127, %p128
      %p130 = scmp.ne.s32.totalorder %s119, %s120
      %p131 = scmp.eq.s32.totalorder %s17, 0
      %p132 = por %p130, %p131
      %p133 = scmp.ne.s32.totalorder %s119, %s120
      %p134 = scmp.eq.s32.totalorder %s18, 1
      %p135 = por %p133, %p134
      %p137 = scmp.ne.s32.totalorder %s120, %s136
      %p138 = scmp.eq.s32.totalorder %s18, 0
      %p139 = por %p137, %p138
      %p140 = scmp.le.s32.totalorder 1, %s12
      %p141 = scmp.lt.s32.totalorder %s12, 3
      %p142 = pnand %p140, %p141
      %p143 = pneg %p142
      // Predicated region
      $region9: #{tpu_custom_call.1} parent=5 // pred_check
        _
      $region10: #{tpu_custom_call.1} parent=5 // pred_check_branch
        %145 = sbr.rel (%p142) target = $region12
      $region11: #{tpu_custom_call.1} parent=5 // pred_region
        %s146 = ssub.s32 %s12, 1
        // Predicated region
        $region13: #{tpu_custom_call.1} parent=11 // pred_check
          %p147 = pneg %p78
        $region14: #{tpu_custom_call.1} parent=11 // pred_check_branch
          %149 = sbr.rel (%p147) target = $region16
        $region15: #{tpu_custom_call.1} parent=11 // pred_region
          %p150 = scmp.lt.s32.totalorder %s22, 0
          %s151 = scalar_select %p150, %s22, 0
          %s152 = smul.addr %s151, 3
          %s153 = smul.addr %s152, 8
          %s154 = scalar_lea.vmem %s1, %s153
        $region16: #{tpu_custom_call.1} parent=11 // pred_fallthru
          _
        // Predicated region
        $region17: #{tpu_custom_call.1} parent=11 // pred_check
          %p155 = pneg %p104
        $region18: #{tpu_custom_call.1} parent=11 // pred_check_branch
          %157 = sbr.rel (%p155) target = $region20
        $region19: #{tpu_custom_call.1} parent=11 // pred_region
          %p158 = scmp.lt.s32.totalorder %s22, 0
          %s159 = scalar_select %p158, %s22, 0
          %s160 = scalar_lea.vmem %s2, %s159
        $region20: #{tpu_custom_call.1} parent=11 // pred_fallthru
          _
      $region12: #{tpu_custom_call.1} parent=5 // pred_fallthru
        _
      %p161 = scmp.lt.s32.totalorder %s12, 2
      // Predicated region
      $region21: #{tpu_custom_call.1} parent=5 // pred_check
        %p162 = pneg %p161
      $region22: #{tpu_custom_call.1} parent=5 // pred_check_branch
        %164 = sbr.rel (%p162) target = $region24
      $region23: #{tpu_custom_call.1} parent=5 // pred_region
        // Predicated region
        $region25: #{tpu_custom_call.1} parent=23 // pred_check
          %p165 = pneg %p46
        $region26: #{tpu_custom_call.1} parent=23 // pred_check_branch
          %167 = sbr.rel (%p165) target = $region28
        $region27: #{tpu_custom_call.1} parent=23 // pred_region
          %p168 = scmp.lt.s32.totalorder %s19, 1
          %s169 = scalar_select %p168, %s19, 1
          %p170 = scmp.lt.s32.totalorder %s20, 0
          %s171 = scalar_select %p170, %s20, 0
          %s172 = smul.addr %s171, 2
          %s173 = smul.addr %s169, 2
          %s174 = sadd.s32 %s172, %s173
          %s175 = smul.addr %s174, 8
          %s176 = scalar_lea.vmem %s0, %s175
        $region28: #{tpu_custom_call.1} parent=23 // pred_fallthru
          _
      $region24: #{tpu_custom_call.1} parent=5 // pred_fallthru
        _
      %p177 = scmp.le.s32.totalorder 1, %s12
      %p178 = scmp.lt.s32.totalorder %s12, 3
      %p179 = pnand %p177, %p178
      %p180 = pneg %p179
      // Predicated region
      $region29: #{tpu_custom_call.1} parent=5 // pred_check
        _
      $region30: #{tpu_custom_call.1} parent=5 // pred_check_branch
        %182 = sbr.rel (%p179) target = $region32
      $region31: #{tpu_custom_call.1} parent=5 // pred_region
        %s183 = ssub.s32 %s12, 1
        %p184 = scmp.lt.s32.totalorder %s21, 1
        %s185 = scalar_select %p184, %s21, 1
        %p186 = scmp.lt.s32.totalorder %s22, 0
        %s187 = scalar_select %p186, %s22, 0
        %s188 = smul.addr %s187, 2
        %s189 = smul.addr %s185, 2
        %s190 = sadd.s32 %s188, %s189
        %s191 = smul.addr %s190, 8
        %s192 = scalar_lea.vmem %s0, %s191
        %p193 = pneg %p52
        %p194 = pneg %p49
        %p195 = scmp.lt.s32.totalorder %s22, 0
        %s196 = scalar_select %p195, %s22, 0
        %s197 = smul.addr %s196, 3
        %s198 = smul.addr %s197, 8
        %s199 = scalar_lea.vmem %s1, %s198
        %p200 = pneg %p78
        %p201 = pneg %p75
        %p202 = scmp.lt.s32.totalorder %s22, 0
        %s203 = scalar_select %p202, %s22, 0
        %s204 = scalar_lea.vmem %s2, %s203
        %p205 = pneg %p104
        %p206 = pneg %p101
        %p207 = pneg %p132
        %p208 = pneg %p129
        %s209 = sand.u32 %s119, 1
        %s210 = scalar_lea.sflag [#allocation4], %s209
        %s211 = sand.u32 %s119, 1
        %s212 = smul.addr %s211, 16
        %s213 = scalar_lea.vmem [#allocation3], %s212
        %p214 = scmp.lt.s32.totalorder %s21, 1
        %s215 = scalar_select %p214, %s21, 1
        %p216 = scmp.lt.s32.totalorder %s22, 0
        %s217 = scalar_select %p216, %s22, 0
        %s218 = smul.addr %s217, 2
        %s219 = smul.addr %s215, 2
        %s220 = sadd.s32 %s218, %s219
        %s221 = smul.addr %s220, 8
        %s222 = scalar_lea.vmem %s0, %s221
        %p223 = scmp.lt.s32.totalorder %s22, 0
        %s224 = scalar_select %p223, %s22, 0
        %s225 = smul.addr %s224, 3
        %s226 = smul.addr %s225, 8
        %s227 = scalar_lea.vmem %s1, %s226
        %p228 = scmp.lt.s32.totalorder %s22, 0
        %s229 = scalar_select %p228, %s22, 0
        %s230 = scalar_lea.vmem %s2, %s229
        %v231 = vlaneseq
        %vm232 = vcmp.ge.s32.totalorder %v231, 0
        %vm233 = vcmp.lt.s32.totalorder %v231, 160
        %vm234 = vmand %vm232, %vm233
        %235 = vst.msk [vmem:[#allocation2] ss:$8 sm:$0x3] %vm234, 0.0
        %236 = vst.msk [vmem:[#allocation2] ss:$8 sm:$0x0] %vm234, 0.0
        %s237 = scalar_lea.vmem [#allocation2], 33
        %238 = vst.msk [vmem:[%s237] ss:$8 sm:$0x3] %vm234, 0.0
        %239 = vst.msk [vmem:[%s237] ss:$8 sm:$0x0] %vm234, 0.0
        %vm240 = vcmask 130049
        %241 = vst.msk [vmem:[#allocation2] sm:$0xfe] %vm240, 0.0
        %vm242 = vcmask 130048
        %243 = vst.msk [vmem:[#allocation2 + $0x10] sm:$0xff] %vm242, 0.0
        %vm244 = vcmask 122880
        %245 = vst.msk [vmem:[#allocation2 + $0x20] sm:$0x1] %vm244, 0.0
        %vm246 = vcmask 261249
        %247 = vst.msk [vmem:[#allocation2 + $0x8] sm:$0xfe] %vm246, 0.0
        %vm248 = vcmask 261248
        %249 = vst.msk [vmem:[#allocation2 + $0x18] sm:$0xff] %vm248, 0.0
        %vm250 = vcmask 254080
        %251 = vst.msk [vmem:[#allocation2 + $0x28] sm:$0x1] %vm250, 0.0
        %v252 = vld [vmem:[%s222] sm:$0xff]
        %v253 = vld [vmem:[%s222 + $0x8] sm:$0xff]
        %vm256 = vcmask 1040384
        %v257 = vrot.slane %v252, 7
        %v258 = vrot.slane %v253, 7
        %v259 = vsel %vm256, %v257, %v258
        %260 = vrot.lane.b32.xlu0 %v257, 16
        %v261 = vpop.permute.xlu0 %260
        %262 = vrot.lane.b32.xlu0 %v259, 16
        %v263 = vpop.permute.xlu0 %262
        %264 = vrot.lane.b32.xlu0 %v258, 16
        %v265 = vpop.permute.xlu0 %264
        %vm269 = vcmask 1047681
        %270 = vst.msk [vmem:[#allocation2] sm:$0xfe] %vm269, %v261
        %271 = vst.msk [vmem:[#allocation2 + $0x8] sm:$0xfe] %vm240, %v261
        %vm272 = vcmask 1047680
        %273 = vst.msk [vmem:[#allocation2 + $0x10] sm:$0xff] %vm272, %v263
        %274 = vst.msk [vmem:[#allocation2 + $0x18] sm:$0xff] %vm242, %v263
        %vm275 = vcmask 1040512
        %276 = vst.msk [vmem:[#allocation2 + $0x20] sm:$0x1] %vm275, %v265
        %277 = vst.msk [vmem:[#allocation2 + $0x28] sm:$0x1] %vm244, %v265
        %v278 = vld [vmem:[%s230] sm:$0x1]
        %v280 = vlaneseq
        %v281 = vshrl.u32 %v280, 7
        %v282 = vsub.s32 0, %v281
        %v283 = vrot.slane %v278, %v282
        %v285 = vld [vmem:[#allocation2] sm:$0xff]
        %v286 = vld [vmem:[#allocation2 + $0x10] sm:$0xff]
        %v287 = vld [vmem:[#allocation2 + $0x20] sm:$0x3]
        %v288 = vld [vmem:[%s227] sm:$0x1]
        %v289 = vlaneseq
        %v290 = vshrl.u32 %v289, 7
        %v291 = vsub.s32 0, %v290
        %v292 = vrot.slane %v288, %v291
        %v293 = vmul.f32 %v285, %v292
        %v294 = vmul.f32 %v286, %v292
        %v295 = vadd.f32 %v283, %v293
        %v296 = vadd.f32 %v283, %v294
        %s297 = scalar_lea.vmem %s227, 8
        %v298 = vld [vmem:[%s297] sm:$0x1]
        %v299 = vlaneseq
        %v300 = vshrl.u32 %v299, 7
        %v301 = vsub.s32 0, %v300
        %v302 = vrot.slane %v298, %v301
        %v303 = vmul.f32 %v285, %v302
        %v304 = vmul.f32 %v286, %v302
        %v305 = vmul.f32 %v287, %v302
        %vm309 = vcmask 1046528
        %v310 = vrot.slane %v303, 1
        %v311 = vrot.slane %v304, 1
        %v312 = vsel %vm309, %v310, %v311
        %v313 = vrot.slane %v305, 1
        %v314 = vsel %vm309, %v311, %v313
        %v317 = vadd.f32 %v295, %v312
        %v318 = vadd.f32 %v296, %v314
        %s319 = scalar_lea.vmem %s227, 16
        %v320 = vld [vmem:[%s319] sm:$0x1]
        %v321 = vlaneseq
        %v322 = vshrl.u32 %v321, 7
        %v323 = vsub.s32 0, %v322
        %v324 = vrot.slane %v320, %v323
        %v325 = vmul.f32 %v285, %v324
        %v326 = vmul.f32 %v286, %v324
        %v327 = vmul.f32 %v287, %v324
        %vm331 = vcmask 1045504
        %v332 = vrot.slane %v325, 2
        %v333 = vrot.slane %v326, 2
        %v334 = vsel %vm331, %v332, %v333
        %v335 = vrot.slane %v327, 2
        %v336 = vsel %vm331, %v333, %v335
        %v339 = vadd.f32 %v317, %v334
        %v340 = vadd.f32 %v318, %v336
        %v341 = vld [vmem:[#allocation2 + $0x8] sm:$0xff]
        %v342 = vld [vmem:[#allocation2 + $0x18] sm:$0xff]
        %v343 = vld [vmem:[#allocation2 + $0x28] sm:$0x3]
        %v344 = vld [vmem:[%s227 + $0x1] sm:$0x1]
        %v345 = vlaneseq
        %v346 = vshrl.u32 %v345, 7
        %v347 = vsub.s32 0, %v346
        %v348 = vrot.slane %v344, %v347
        %350 = vrot.lane.b32.xlu0 %v348, 8
        %v351 = vpop.permute.xlu0 %350
        %v353 = vmul.f32 %v285, %v351
        %v354 = vmul.f32 %v341, %v351
        %v355 = vmul.f32 %v286, %v351
        %v356 = vmul.f32 %v342, %v351
        %361 = vrot.lane.b32.xlu0 %v353, 120
        %v362 = vpop.permute.xlu0 %361
        %363 = vrot.lane.b32.xlu0 %v354, 120
        %v364 = vpop.permute.xlu0 %363
        %365 = vrot.lane.b32.xlu0 %v355, 120
        %v366 = vpop.permute.xlu0 %365
        %367 = vrot.lane.b32.xlu0 %v356, 120
        %v368 = vpop.permute.xlu0 %367
        %vm369 = vcmask 982016
        %v370 = vsel %vm369, %v362, %v364
        %v371 = vsel %vm369, %v366, %v368
        %v374 = vadd.f32 %v339, %v370
        %v375 = vadd.f32 %v340, %v371
        %v376 = vld [vmem:[%s297 + $0x1] sm:$0x1]
        %v377 = vlaneseq
        %v378 = vshrl.u32 %v377, 7
        %v379 = vsub.s32 0, %v378
        %v380 = vrot.slane %v376, %v379
        %382 = vrot.lane.b32.xlu0 %v380, 8
        %v383 = vpop.permute.xlu0 %382
        %v385 = vmul.f32 %v285, %v383
        %v386 = vmul.f32 %v341, %v383
        %v387 = vmul.f32 %v286, %v383
        %v388 = vmul.f32 %v342, %v383
        %v389 = vmul.f32 %v287, %v383
        %v390 = vmul.f32 %v343, %v383
        %v397 = vrot.slane %v385, 1
        %v398 = vrot.slane %v387, 1
        %v399 = vsel %vm309, %v397, %v398
        %v400 = vrot.slane %v386, 1
        %v401 = vrot.slane %v388, 1
        %v402 = vsel %vm309, %v400, %v401
        %v403 = vrot.slane %v389, 1
        %v404 = vsel %vm309, %v398, %v403
        %v405 = vrot.slane %v390, 1
        %v406 = vsel %vm309, %v401, %v405
        %407 = vrot.lane.b32.xlu0 %v399, 120
        %v408 = vpop.permute.xlu0 %407
        %409 = vrot.lane.b32.xlu0 %v402, 120
        %v410 = vpop.permute.xlu0 %409
        %411 = vrot.lane.b32.xlu0 %v404, 120
        %v412 = vpop.permute.xlu0 %411
        %413 = vrot.lane.b32.xlu0 %v406, 120
        %v414 = vpop.permute.xlu0 %413
        %v415 = vsel %vm369, %v408, %v410
        %v416 = vsel %vm369, %v412, %v414
        %v419 = vadd.f32 %v374, %v415
        %v420 = vadd.f32 %v375, %v416
        %v421 = vld [vmem:[%s319 + $0x1] sm:$0x1]
        %v422 = vlaneseq
        %v423 = vshrl.u32 %v422, 7
        %v424 = vsub.s32 0, %v423
        %v425 = vrot.slane %v421, %v424
        %427 = vrot.lane.b32.xlu0 %v425, 8
        %v428 = vpop.permute.xlu0 %427
        %v430 = vmul.f32 %v285, %v428
        %v431 = vmul.f32 %v341, %v428
        %v432 = vmul.f32 %v286, %v428
        %v433 = vmul.f32 %v342, %v428
        %v434 = vmul.f32 %v287, %v428
        %v435 = vmul.f32 %v343, %v428
        %v442 = vrot.slane %v430, 2
        %v443 = vrot.slane %v432, 2
        %v444 = vsel %vm331, %v442, %v443
        %v445 = vrot.slane %v431, 2
        %v446 = vrot.slane %v433, 2
        %v447 = vsel %vm331, %v445, %v446
        %v448 = vrot.slane %v434, 2
        %v449 = vsel %vm331, %v443, %v448
        %v450 = vrot.slane %v435, 2
        %v451 = vsel %vm331, %v446, %v450
        %452 = vrot.lane.b32.xlu0 %v444, 120
        %v453 = vpop.permute.xlu0 %452
        %454 = vrot.lane.b32.xlu0 %v447, 120
        %v455 = vpop.permute.xlu0 %454
        %456 = vrot.lane.b32.xlu0 %v449, 120
        %v457 = vpop.permute.xlu0 %456
        %458 = vrot.lane.b32.xlu0 %v451, 120
        %v459 = vpop.permute.xlu0 %458
        %v460 = vsel %vm369, %v453, %v455
        %v461 = vsel %vm369, %v457, %v459
        %v464 = vadd.f32 %v419, %v460
        %v465 = vadd.f32 %v420, %v461
        %v466 = vld [vmem:[%s227 + $0x2] sm:$0x1]
        %v467 = vlaneseq
        %v468 = vshrl.u32 %v467, 7
        %v469 = vsub.s32 0, %v468
        %v470 = vrot.slane %v466, %v469
        %472 = vrot.lane.b32.xlu0 %v470, 16
        %v473 = vpop.permute.xlu0 %472
        %v475 = vmul.f32 %v285, %v473
        %v476 = vmul.f32 %v341, %v473
        %v477 = vmul.f32 %v286, %v473
        %v478 = vmul.f32 %v342, %v473
        %483 = vrot.lane.b32.xlu0 %v475, 112
        %v484 = vpop.permute.xlu0 %483
        %485 = vrot.lane.b32.xlu0 %v476, 112
        %v486 = vpop.permute.xlu0 %485
        %487 = vrot.lane.b32.xlu0 %v477, 112
        %v488 = vpop.permute.xlu0 %487
        %489 = vrot.lane.b32.xlu0 %v478, 112
        %v490 = vpop.permute.xlu0 %489
        %vm491 = vcmask 916480
        %v492 = vsel %vm491, %v484, %v486
        %v493 = vsel %vm491, %v488, %v490
        %v496 = vadd.f32 %v464, %v492
        %v497 = vadd.f32 %v465, %v493
        %v498 = vld [vmem:[%s297 + $0x2] sm:$0x1]
        %v499 = vlaneseq
        %v500 = vshrl.u32 %v499, 7
        %v501 = vsub.s32 0, %v500
        %v502 = vrot.slane %v498, %v501
        %504 = vrot.lane.b32.xlu0 %v502, 16
        %v505 = vpop.permute.xlu0 %504
        %v507 = vmul.f32 %v285, %v505
        %v508 = vmul.f32 %v341, %v505
        %v509 = vmul.f32 %v286, %v505
        %v510 = vmul.f32 %v342, %v505
        %v511 = vmul.f32 %v287, %v505
        %v512 = vmul.f32 %v343, %v505
        %v519 = vrot.slane %v507, 1
        %v520 = vrot.slane %v509, 1
        %v521 = vsel %vm309, %v519, %v520
        %v522 = vrot.slane %v508, 1
        %v523 = vrot.slane %v510, 1
        %v524 = vsel %vm309, %v522, %v523
        %v525 = vrot.slane %v511, 1
        %v526 = vsel %vm309, %v520, %v525
        %v527 = vrot.slane %v512, 1
        %v528 = vsel %vm309, %v523, %v527
        %529 = vrot.lane.b32.xlu0 %v521, 112
        %v530 = vpop.permute.xlu0 %529
        %531 = vrot.lane.b32.xlu0 %v524, 112
        %v532 = vpop.permute.xlu0 %531
        %533 = vrot.lane.b32.xlu0 %v526, 112
        %v534 = vpop.permute.xlu0 %533
        %535 = vrot.lane.b32.xlu0 %v528, 112
        %v536 = vpop.permute.xlu0 %535
        %v537 = vsel %vm491, %v530, %v532
        %v538 = vsel %vm491, %v534, %v536
        %v541 = vadd.f32 %v496, %v537
        %v542 = vadd.f32 %v497, %v538
        %v543 = vld [vmem:[%s319 + $0x2] sm:$0x1]
        %v544 = vlaneseq
        %v545 = vshrl.u32 %v544, 7
        %v546 = vsub.s32 0, %v545
        %v547 = vrot.slane %v543, %v546
        %549 = vrot.lane.b32.xlu0 %v547, 16
        %v550 = vpop.permute.xlu0 %549
        %v552 = vmul.f32 %v285, %v550
        %v553 = vmul.f32 %v341, %v550
        %v554 = vmul.f32 %v286, %v550
        %v555 = vmul.f32 %v342, %v550
        %v556 = vmul.f32 %v287, %v550
        %v557 = vmul.f32 %v343, %v550
        %v564 = vrot.slane %v552, 2
        %v565 = vrot.slane %v554, 2
        %v566 = vsel %vm331, %v564, %v565
        %v567 = vrot.slane %v553, 2
        %v568 = vrot.slane %v555, 2
        %v569 = vsel %vm331, %v567, %v568
        %v570 = vrot.slane %v556, 2
        %v571 = vsel %vm331, %v565, %v570
        %v572 = vrot.slane %v557, 2
        %v573 = vsel %vm331, %v568, %v572
        %574 = vrot.lane.b32.xlu0 %v566, 112
        %v575 = vpop.permute.xlu0 %574
        %576 = vrot.lane.b32.xlu0 %v569, 112
        %v577 = vpop.permute.xlu0 %576
        %578 = vrot.lane.b32.xlu0 %v571, 112
        %v579 = vpop.permute.xlu0 %578
        %580 = vrot.lane.b32.xlu0 %v573, 112
        %v581 = vpop.permute.xlu0 %580
        %v582 = vsel %vm491, %v575, %v577
        %v583 = vsel %vm491, %v579, %v581
        %v586 = vadd.f32 %v541, %v582
        %v587 = vadd.f32 %v542, %v583
        %v588 = vld [vmem:[%s227 + $0x3] sm:$0x1]
        %v589 = vlaneseq
        %v590 = vshrl.u32 %v589, 7
        %v591 = vsub.s32 0, %v590
        %v592 = vrot.slane %v588, %v591
        %594 = vrot.lane.b32.xlu0 %v592, 24
        %v595 = vpop.permute.xlu0 %594
        %v597 = vmul.f32 %v285, %v595
        %v598 = vmul.f32 %v341, %v595
        %v599 = vmul.f32 %v286, %v595
        %v600 = vmul.f32 %v342, %v595
        %605 = vrot.lane.b32.xlu0 %v597, 104
        %v606 = vpop.permute.xlu0 %605
        %607 = vrot.lane.b32.xlu0 %v598, 104
        %v608 = vpop.permute.xlu0 %607
        %609 = vrot.lane.b32.xlu0 %v599, 104
        %v610 = vpop.permute.xlu0 %609
        %611 = vrot.lane.b32.xlu0 %v600, 104
        %v612 = vpop.permute.xlu0 %611
        %vm613 = vcmask 850944
        %v614 = vsel %vm613, %v606, %v608
        %v615 = vsel %vm613, %v610, %v612
        %v618 = vadd.f32 %v586, %v614
        %v619 = vadd.f32 %v587, %v615
        %v620 = vld [vmem:[%s297 + $0x3] sm:$0x1]
        %v621 = vlaneseq
        %v622 = vshrl.u32 %v621, 7
        %v623 = vsub.s32 0, %v622
        %v624 = vrot.slane %v620, %v623
        %626 = vrot.lane.b32.xlu0 %v624, 24
        %v627 = vpop.permute.xlu0 %626
        %v629 = vmul.f32 %v285, %v627
        %v630 = vmul.f32 %v341, %v627
        %v631 = vmul.f32 %v286, %v627
        %v632 = vmul.f32 %v342, %v627
        %v633 = vmul.f32 %v287, %v627
        %v634 = vmul.f32 %v343, %v627
        %v641 = vrot.slane %v629, 1
        %v642 = vrot.slane %v631, 1
        %v643 = vsel %vm309, %v641, %v642
        %v644 = vrot.slane %v630, 1
        %v645 = vrot.slane %v632, 1
        %v646 = vsel %vm309, %v644, %v645
        %v647 = vrot.slane %v633, 1
        %v648 = vsel %vm309, %v642, %v647
        %v649 = vrot.slane %v634, 1
        %v650 = vsel %vm309, %v645, %v649
        %651 = vrot.lane.b32.xlu0 %v643, 104
        %v652 = vpop.permute.xlu0 %651
        %653 = vrot.lane.b32.xlu0 %v646, 104
        %v654 = vpop.permute.xlu0 %653
        %655 = vrot.lane.b32.xlu0 %v648, 104
        %v656 = vpop.permute.xlu0 %655
        %657 = vrot.lane.b32.xlu0 %v650, 104
        %v658 = vpop.permute.xlu0 %657
        %v659 = vsel %vm613, %v652, %v654
        %v660 = vsel %vm613, %v656, %v658
        %v663 = vadd.f32 %v618, %v659
        %v664 = vadd.f32 %v619, %v660
        %v665 = vld [vmem:[%s319 + $0x3] sm:$0x1]
        %v666 = vlaneseq
        %v667 = vshrl.u32 %v666, 7
        %v668 = vsub.s32 0, %v667
        %v669 = vrot.slane %v665, %v668
        %671 = vrot.lane.b32.xlu0 %v669, 24
        %v672 = vpop.permute.xlu0 %671
        %v674 = vmul.f32 %v285, %v672
        %v675 = vmul.f32 %v341, %v672
        %v676 = vmul.f32 %v286, %v672
        %v677 = vmul.f32 %v342, %v672
        %v678 = vmul.f32 %v287, %v672
        %v679 = vmul.f32 %v343, %v672
        %v686 = vrot.slane %v674, 2
        %v687 = vrot.slane %v676, 2
        %v688 = vsel %vm331, %v686, %v687
        %v689 = vrot.slane %v675, 2
        %v690 = vrot.slane %v677, 2
        %v691 = vsel %vm331, %v689, %v690
        %v692 = vrot.slane %v678, 2
        %v693 = vsel %vm331, %v687, %v692
        %v694 = vrot.slane %v679, 2
        %v695 = vsel %vm331, %v690, %v694
        %696 = vrot.lane.b32.xlu0 %v688, 104
        %v697 = vpop.permute.xlu0 %696
        %698 = vrot.lane.b32.xlu0 %v691, 104
        %v699 = vpop.permute.xlu0 %698
        %700 = vrot.lane.b32.xlu0 %v693, 104
        %v701 = vpop.permute.xlu0 %700
        %702 = vrot.lane.b32.xlu0 %v695, 104
        %v703 = vpop.permute.xlu0 %702
        %v704 = vsel %vm613, %v697, %v699
        %v705 = vsel %vm613, %v701, %v703
        %v708 = vadd.f32 %v663, %v704
        %v709 = vadd.f32 %v664, %v705
        %v710 = vld [vmem:[%s227 + $0x4] sm:$0x1]
        %v711 = vlaneseq
        %v712 = vshrl.u32 %v711, 7
        %v713 = vsub.s32 0, %v712
        %v714 = vrot.slane %v710, %v713
        %716 = vrot.lane.b32.xlu0 %v714, 32
        %v717 = vpop.permute.xlu0 %716
        %v719 = vmul.f32 %v285, %v717
        %v720 = vmul.f32 %v341, %v717
        %v721 = vmul.f32 %v286, %v717
        %v722 = vmul.f32 %v342, %v717
        %727 = vrot.lane.b32.xlu0 %v719, 96
        %v728 = vpop.permute.xlu0 %727
        %729 = vrot.lane.b32.xlu0 %v720, 96
        %v730 = vpop.permute.xlu0 %729
        %731 = vrot.lane.b32.xlu0 %v721, 96
        %v732 = vpop.permute.xlu0 %731
        %733 = vrot.lane.b32.xlu0 %v722, 96
        %v734 = vpop.permute.xlu0 %733
        %vm735 = vcmask 785408
        %v736 = vsel %vm735, %v728, %v730
        %v737 = vsel %vm735, %v732, %v734
        %v740 = vadd.f32 %v708, %v736
        %v741 = vadd.f32 %v709, %v737
        %v742 = vld [vmem:[%s297 + $0x4] sm:$0x1]
        %v743 = vlaneseq
        %v744 = vshrl.u32 %v743, 7
        %v745 = vsub.s32 0, %v744
        %v746 = vrot.slane %v742, %v745
        %748 = vrot.lane.b32.xlu0 %v746, 32
        %v749 = vpop.permute.xlu0 %748
        %v751 = vmul.f32 %v285, %v749
        %v752 = vmul.f32 %v341, %v749
        %v753 = vmul.f32 %v286, %v749
        %v754 = vmul.f32 %v342, %v749
        %v755 = vmul.f32 %v287, %v749
        %v756 = vmul.f32 %v343, %v749
        %v763 = vrot.slane %v751, 1
        %v764 = vrot.slane %v753, 1
        %v765 = vsel %vm309, %v763, %v764
        %v766 = vrot.slane %v752, 1
        %v767 = vrot.slane %v754, 1
        %v768 = vsel %vm309, %v766, %v767
        %v769 = vrot.slane %v755, 1
        %v770 = vsel %vm309, %v764, %v769
        %v771 = vrot.slane %v756, 1
        %v772 = vsel %vm309, %v767, %v771
        %773 = vrot.lane.b32.xlu0 %v765, 96
        %v774 = vpop.permute.xlu0 %773
        %775 = vrot.lane.b32.xlu0 %v768, 96
        %v776 = vpop.permute.xlu0 %775
        %777 = vrot.lane.b32.xlu0 %v770, 96
        %v778 = vpop.permute.xlu0 %777
        %779 = vrot.lane.b32.xlu0 %v772, 96
        %v780 = vpop.permute.xlu0 %779
        %v781 = vsel %vm735, %v774, %v776
        %v782 = vsel %vm735, %v778, %v780
        %v785 = vadd.f32 %v740, %v781
        %v786 = vadd.f32 %v741, %v782
        %v787 = vld [vmem:[%s319 + $0x4] sm:$0x1]
        %v788 = vlaneseq
        %v789 = vshrl.u32 %v788, 7
        %v790 = vsub.s32 0, %v789
        %v791 = vrot.slane %v787, %v790
        %793 = vrot.lane.b32.xlu0 %v791, 32
        %v794 = vpop.permute.xlu0 %793
        %v796 = vmul.f32 %v285, %v794
        %v797 = vmul.f32 %v341, %v794
        %v798 = vmul.f32 %v286, %v794
        %v799 = vmul.f32 %v342, %v794
        %v800 = vmul.f32 %v287, %v794
        %v801 = vmul.f32 %v343, %v794
        %v808 = vrot.slane %v796, 2
        %v809 = vrot.slane %v798, 2
        %v810 = vsel %vm331, %v808, %v809
        %v811 = vrot.slane %v797, 2
        %v812 = vrot.slane %v799, 2
        %v813 = vsel %vm331, %v811, %v812
        %v814 = vrot.slane %v800, 2
        %v815 = vsel %vm331, %v809, %v814
        %v816 = vrot.slane %v801, 2
        %v817 = vsel %vm331, %v812, %v816
        %818 = vrot.lane.b32.xlu0 %v810, 96
        %v819 = vpop.permute.xlu0 %818
        %820 = vrot.lane.b32.xlu0 %v813, 96
        %v821 = vpop.permute.xlu0 %820
        %822 = vrot.lane.b32.xlu0 %v815, 96
        %v823 = vpop.permute.xlu0 %822
        %824 = vrot.lane.b32.xlu0 %v817, 96
        %v825 = vpop.permute.xlu0 %824
        %v826 = vsel %vm735, %v819, %v821
        %v827 = vsel %vm735, %v823, %v825
        %v830 = vadd.f32 %v785, %v826
        %v831 = vadd.f32 %v786, %v827
        %832 = vst [vmem:[%s213] sm:$0xff] %v830
        %833 = vst [vmem:[%s213 + $0x8] sm:$0xff] %v831
        %s834 = sand.u32 %s119, 1
        %s835 = scalar_lea.sflag [#allocation4], %s834
        %s836 = sand.u32 %s119, 1
        %s837 = smul.addr %s836, 16
        %s838 = scalar_lea.vmem [#allocation3], %s837
        // Predicated region
        $region33: #{tpu_custom_call.1} parent=31 // pred_check
          %p839 = pneg %p129
        $region34: #{tpu_custom_call.1} parent=31 // pred_check_branch
          %841 = sbr.rel (%p839) target = $region36
        $region35: #{tpu_custom_call.1} parent=31 // pred_region
          %s843 = ssub.s32 256, 256
          %844 = vsyncadd %s835, %s843
          %s845 = smul.addr %s22, 2
          %s846 = smul.addr %s21, 2
          %s847 = sadd.s32 %s845, %s846
          %s848 = smul.addr %s847, 128
          %s849 = scalar_lea.hbm %s3, %s848
          %s850 = sshll.u32 %s838, 4
          %s851 = int_to_ptr.vmem [resolvable:$true] %s850
          %856 = dma.vmem_to_hbm [thread:$0]  %s851, 256, %s849, %s835, 128, 128, 8
        $region36: #{tpu_custom_call.1} parent=31 // pred_fallthru
          _
      $region32: #{tpu_custom_call.1} parent=5 // pred_fallthru
        _
      %p857 = scmp.le.s32.totalorder 2, %s12
      // Predicated region
      $region37: #{tpu_custom_call.1} parent=5 // pred_check
        %p858 = pneg %p857
      $region38: #{tpu_custom_call.1} parent=5 // pred_check_branch
        %860 = sbr.rel (%p858) target = $region40
      $region39: #{tpu_custom_call.1} parent=5 // pred_region
        %s861 = ssub.s32 %s12, 2
        // Predicated region
        $region41: #{tpu_custom_call.1} parent=39 // pred_check
          %p862 = pneg %p135
        $region42: #{tpu_custom_call.1} parent=39 // pred_check_branch
          %864 = sbr.rel (%p862) target = $region44
        $region43: #{tpu_custom_call.1} parent=39 // pred_region
          %s865 = sand.u32 %s120, 1
          %s866 = scalar_lea.sflag [#allocation4], %s865
          %s867 = sand.u32 %s120, 1
          %s868 = smul.addr %s867, 16
          %s869 = scalar_lea.vmem [#allocation3], %s868
          %870 = dma.done %s866, 256
        $region44: #{tpu_custom_call.1} parent=39 // pred_fallthru
          _
      $region40: #{tpu_custom_call.1} parent=5 // pred_fallthru
        _
    $region6: #{tpu_custom_call.1} parent=1 // loop_footer
      %s16 = sadd.s32 1, %s12
    $region7: #{tpu_custom_call.1} parent=1 // loop_footer_branch
      %11 = sbr.rel target = $region3
    $region8: #{tpu_custom_call.1} parent=1 // loop_exit
      _
    %871 = vsyncpa [#allocation4], 1
    %s872 = scalar_lea.sflag [#allocation4], 1
    %873 = vsyncpa %s872, 1

</llo_original>
